<compile_context>
chip_gen: v6e
topology: v6e:2x2x1
jax: 0.10.0
libtpu: 0.0.40
codegen_flags: <defaults>
</compile_context>

<pallas_src>
import jax
import jax.numpy as jnp
from jax.experimental import pallas as pl
from jax.experimental.pallas import tpu as pltpu

_LANES = 128


def _round_up(a, b):
    return ((a + b - 1) // b) * b


def _num_tensorcores():
    """Best-effort TensorCore count per device (v7x -> 2, v5e/v6e -> 1)."""
    try:
        info = pltpu.get_tpu_info()
        for attr in ("num_cores", "core_count", "num_tensorcores",
                     "tensorcores_per_chip"):
            v = getattr(info, attr, None)
            if v:
                return int(v)
    except Exception:
        pass
    try:
        dev = jax.devices()[0]
        for attr in ("num_cores", "core_count"):
            v = getattr(dev, attr, None)
            if v:
                return int(v)
        kind = str(getattr(dev, "device_kind", "")).lower()
        if ("v4" in kind) or ("v5p" in kind) or ("7" in kind):
            return 2
    except Exception:
        pass
    return 1


def _choose_tiling(rows, sublane, itemsize, target_block_bytes, num_cores):
    """Pick (rows_per_block, steps) with balanced blocks and even core split."""
    # Rows per block at the target block size, rounded down to the packed
    # sublane count so vector loads/stores stay unmasked.
    tr_target = max(
        sublane,
        (target_block_bytes // (_LANES * itemsize)) // sublane * sublane,
    )
    if rows <= sublane:
        # Single block covering the full (tiny) slab -- always a legal block.
        return rows, 1

    # Balanced blocks: pick the number of steps first, then split rows
    # roughly evenly across them instead of one fixed-size block plus a runt.
    steps = pl.cdiv(rows, tr_target)
    if num_cores > 1:
        # Even step count so the "parallel" axis shards evenly across the
        # TensorCores (v7x).  Single-TC chips skip this (grid is sequential).
        steps = _round_up(steps, num_cores)
    tr = _round_up(pl.cdiv(rows, steps), sublane)
    tr = min(tr, rows)          # block == full dim is always legal
    steps = pl.cdiv(rows, tr)
    return tr, steps


def _relu_kernel(x_ref, o_ref):
    # Elementwise ReLU on the VPU (weak-typed 0 preserves dtype).
    o_ref[...] = jnp.maximum(x_ref[...], 0)


def my_relu(x, *, target_block_bytes=4 * 1024 * 1024):
    """ReLU forward identical to nn.ReLU()(x), implemented in Pallas."""
    orig_shape = x.shape
    dtype = x.dtype
    n = int(x.size)
    if n == 0:
        return x

    itemsize = jnp.dtype(dtype).itemsize
    # Sub-32-bit dtypes pack along sublanes: keep block rows a multiple of
    # 8 (f32) / 16 (bf16) / 32 (int8, fp8).
    packing = max(1, 4 // itemsize)
    sublane = 8 * packing

    flat = x.reshape(-1)

    # Fast path for typical NN shapes: n % 128 == 0 -> free metadata reshape,
    # no pad, no post-slice.
    n_pad = _round_up(n, _LANES)
    padded = n_pad != n
    if padded:
        # TODO(synk): ragged tail still pays a full pad + slice round trip.
        flat = jnp.pad(flat, (0, n_pad - n))

    rows = n_pad // _LANES
    slab = flat.reshape(rows, _LANES)

    tr, steps = _choose_tiling(
        rows, sublane, itemsize, target_block_bytes, _num_tensorcores()
    )
    grid = (steps,)

    out_slab = pl.pallas_call(
        _relu_kernel,
        out_shape=jax.ShapeDtypeStruct((rows, _LANES), dtype),
        grid_spec=pltpu.PrefetchScalarGridSpec(
            num_scalar_prefetch=0,
            grid=grid,
            in_specs=[pl.BlockSpec((tr, _LANES), lambda i: (i, 0))],
            out_specs=pl.BlockSpec((tr, _LANES), lambda i: (i, 0)),
        ),
        compiler_params=pltpu.CompilerParams(
            dimension_semantics=("parallel",),
            vmem_limit_bytes=32 * 1024 * 1024,
        ),
        cost_estimate=pl.CostEstimate(
            flops=n,
            transcendentals=0,
            bytes_accessed=2 * n * itemsize,
        ),
    )(slab)

    out = out_slab
    if padded:
        out = out.reshape(-1)[:n]
    return out.reshape(orig_shape)


if __name__ == "__main__":
    key = jax.random.PRNGKey(0)
    # NCHW input, small shapes: batch=2, channels=4, spatial=16x16.
    x = jax.random.normal(key, (2, 4, 16, 16), dtype=jnp.float32)

    y = my_relu(x)
    y = jax.block_until_ready(y)

    # Correctness check against plain JAX relu.
    y_ref = jnp.maximum(x, 0.0)
    assert y.shape == x.shape and y.dtype == x.dtype
    assert bool(jnp.all(y == y_ref))

    print("KERNEL_OK")
</pallas_src>

<mosaic_0001>
module attributes {stable_mosaic.version = 11 : i64} {
  func.func @_relu_kernel(%arg0: i32, %arg1: memref<16x128xf32, #tpu.memory_space<vmem>>, %arg2: memref<16x128xf32, #tpu.memory_space<vmem>>) attributes {dimension_semantics = [#tpu.dimension_semantics<parallel>], iteration_bounds = array<i64: 1>, scalar_prefetch = 0 : i64, scratch_operands = 0 : i64, tpu.core_type = #tpu.core_type<tc>, window_params = [{transform_indices = @transform_0, window_bounds = array<i64: 16, 128>}, {transform_indices = @transform_1, window_bounds = array<i64: 16, 128>}]} {
    %c0 = arith.constant 0 : index
    %c0_0 = arith.constant 0 : index
    %0 = vector.load %arg1[%c0, %c0_0] : memref<16x128xf32, #tpu.memory_space<vmem>>, vector<16x128xf32>
    %cst = arith.constant 0.000000e+00 : f32
    %1 = vector.broadcast %cst : f32 to vector<16x128xf32>
    %2 = arith.maximumf %0, %1 : vector<16x128xf32>
    %c0_1 = arith.constant 0 : index
    %c0_2 = arith.constant 0 : index
    %3 = vector.load %arg2[%c0_1, %c0_2] : memref<16x128xf32, #tpu.memory_space<vmem>>, vector<16x128xf32>
    tpu.vector_store %arg2[%c0_1, %c0_2], %2 {strides = array<i32>} : memref<16x128xf32, #tpu.memory_space<vmem>>, vector<16x128xf32>,
    return
  }
  func.func @transform_0(%arg0: i32) -> (i32, i32) {
    %c0_i32 = arith.constant 0 : i32
    %c0_i32_0 = arith.constant 0 : i32
    return %arg0, %c0_i32 : i32, i32
  }
  func.func @transform_1(%arg0: i32) -> (i32, i32) {
    %c0_i32 = arith.constant 0 : i32
    %c0_i32_0 = arith.constant 0 : i32
    return %arg0, %c0_i32 : i32, i32
  }
}

</mosaic_0001>

<llo_original>
// kernel: tpu_custom_call.1
$region0: #{tpu_custom_call.1}
  #allocation0 [shape = 'u32[]', space=smem, size = 0x4, offset = 0x4, fixed_abs, tag = 'smem constant byte address 0x4 - core index']
  #allocation1 [shape = 'u32[144,128]{1,0:T(1,128)}', space=vmem, size = 0x12000, scoped, tag = 'internal scratch']
  %s0 = inlined_call_operand.hbm [shape: f32[16,128], index: 0, kind: input, shape index: {}]
  %s1 = inlined_call_operand.hbm [shape: f32[16,128], index: 1, kind: output, shape index: {}]
  %s2 = sld [smem:[#allocation0]]
  $region18: #{tpu_custom_call.1} parent=0
    _
  %s4 = ssub.s32 1, %s2
  %s5 = scalar_select 0, %s4, %s2
  $region1: #{tpu_custom_call.1} parent=0
    #allocation2 [shape = 'u8[8192]{0}', space=vmem, size = 0x2000, scoped, tag = 'input window, operand 0, single buffered']
    #allocation3 [shape = 's32[1]{0}', space=sflag, size = 0x4, scoped, tag = 'scoped memory for tpu_custom_call.1']
    #allocation4 [shape = 's32[1]{0}', space=sflag, size = 0x4, scoped, tag = 'scoped memory for tpu_custom_call.1']
    #allocation5 [shape = 'u8[8192]{0}', space=vmem, size = 0x2000, scoped, tag = 'output window, operand 0, single buffered']
    %6 = vsyncpa [#allocation3], 0
    %7 = vsyncpa [#allocation4], 0
    // Predicated region
    $region2: #{tpu_custom_call.1} parent=1 // pred_check
      _
    $region3: #{tpu_custom_call.1} parent=1 // pred_check_branch
      %9 = sbr.rel (0) target = $region5
    $region4: #{tpu_custom_call.1} parent=1 // pred_region
      %s11 = ssub.s32 256, 256
      %12 = vsyncadd [#allocation3], %s11
      %s13 = sshll.u32 [#allocation2], 4
      %s14 = int_to_ptr.vmem [resolvable:$true] %s13
      %19 = dma.hbm_to_vmem [thread:$0]  %s0, 256, %s14, [#allocation3], 128, 128, 8
    $region5: #{tpu_custom_call.1} parent=1 // pred_fallthru
      _
    // Predicated region
    $region6: #{tpu_custom_call.1} parent=1 // pred_check
      _
    $region7: #{tpu_custom_call.1} parent=1 // pred_check_branch
      %21 = sbr.rel (0) target = $region9
    $region8: #{tpu_custom_call.1} parent=1 // pred_region
      %22 = dma.done [#allocation3], 256
    $region9: #{tpu_custom_call.1} parent=1 // pred_fallthru
      _
    %v23 = vld [vmem:[#allocation2] sm:$0xff]
    %v24 = vld [vmem:[#allocation2 + $0x8] sm:$0xff]
    %v25 = vmax.f32 %v23, 0.0
    %v26 = vmax.f32 %v24, 0.0
    %27 = vst [vmem:[#allocation5] sm:$0xff] %v25
    %28 = vst [vmem:[#allocation5 + $0x8] sm:$0xff] %v26
    // Predicated region
    $region10: #{tpu_custom_call.1} parent=1 // pred_check
      _
    $region11: #{tpu_custom_call.1} parent=1 // pred_check_branch
      %30 = sbr.rel (0) target = $region13
    $region12: #{tpu_custom_call.1} parent=1 // pred_region
      %s32 = ssub.s32 256, 256
      %33 = vsyncadd [#allocation4], %s32
      %s34 = sshll.u32 [#allocation5], 4
      %s35 = int_to_ptr.vmem [resolvable:$true] %s34
      %40 = dma.vmem_to_hbm [thread:$0]  %s35, 256, %s1, [#allocation4], 128, 128, 8
    $region13: #{tpu_custom_call.1} parent=1 // pred_fallthru
      _
    // Predicated region
    $region14: #{tpu_custom_call.1} parent=1 // pred_check
      _
    $region15: #{tpu_custom_call.1} parent=1 // pred_check_branch
      %42 = sbr.rel (0) target = $region17
    $region16: #{tpu_custom_call.1} parent=1 // pred_region
      %43 = dma.done [#allocation4], 256
    $region17: #{tpu_custom_call.1} parent=1 // pred_fallthru
      _
    %44 = vsyncpa [#allocation3], 1
    %45 = vsyncpa [#allocation4], 1

</llo_original>
